<compile_context>
chip_gen: v7x
topology: tpu7x:2x2x1
jax: 0.10.0
libtpu: 0.0.40
codegen_flags: <defaults>
</compile_context>

<pallas_src>
import functools

import jax
import jax.numpy as jnp
from jax.experimental import pallas as pl
from jax.experimental.pallas import tpu as pltpu

# ---------------- Config (mirrors the torch `config` object) ----------------
EMBED_SIZE = 32
MAX_SEN_LEN = 16
N_GRAM = 3
T = MAX_SEN_LEN - N_GRAM + 1      # 14 : Linear output width and u_w length
BATCH_SIZE = 2
SEQ_LEN = T                        # phrase attention runs on the n-gram features


def phrase_attention_kernel(x_ref, wp_ref, out_ref, *, batch, seq, d):
    """Single-shot kernel (no grid).

    x_ref  : (B*S, D)   embeddings, flat over (batch, seq) -- no-copy reshape
    wp_ref : (T, D+2)   packed params: [:, :D]=W, [:, D]=bias, [:, D+1]=u_w
    out_ref: (1, B*S)   log-attention, flattened over (batch, seq)
    """
    x = x_ref[...]                       # (BS, D)
    w = wp_ref[:, :d]                    # (T, D)
    b = wp_ref[:, d:d + 1]               # (T, 1)
    uw = wp_ref[:, d + 1:d + 2]          # (T, 1)

    # One MXU matmul for the whole batch, contracting D on both operands:
    # (T, D) x (BS, D)^T -> (T, BS).  The transposed RHS is handled by Mosaic.
    ut = jnp.tanh(
        jax.lax.dot_general(
            w, x,
            dimension_numbers=(((1,), (1,)), ((), ())),
            preferred_element_type=jnp.float32,
        )
        + b
    )

    # u_w contraction as VPU multiply + sublane reduce -> (1, BS).
    logits = jnp.sum(ut * uw, axis=0, keepdims=True)

    # Per-batch log-softmax over lane groups of `seq` columns (no reshapes).
    # Keep the masked reductions as selects (where), not multiply-by-mask.
    col = jax.lax.broadcasted_iota(jnp.int32, logits.shape, 1)
    out = jnp.zeros_like(logits)
    for bi in range(batch):  # static unroll; batch is small & known at trace time
        grp = (col >= bi * seq) & (col < (bi + 1) * seq)
        mx = jnp.max(jnp.where(grp, logits, -jnp.inf))
        ssum = jnp.sum(jnp.where(grp, jnp.exp(logits - mx), 0.0))
        out = jnp.where(grp, logits - mx - jnp.log(ssum), out)
    out_ref[...] = out


def pack_params(W, bias, u_w):
    """Fuse the three tiny parameter operands into one (T, D+2) slab.

    Done once at parameter-init time, so the kernel needs only 2 input DMAs.
    """
    return jnp.concatenate([W, bias.reshape(-1, 1), u_w.reshape(-1, 1)], axis=1)


def phrase_attention(embedding, packed_params):
    """embedding: (B, S, D); packed_params: (T, D+2) -> (B, S)."""
    B, S, D = embedding.shape
    BS = B * S

    # True no-copy reshape (row-major flatten) -- no hidden relayout kernel.
    x = embedding.reshape(BS, D)

    kern = functools.partial(phrase_attention_kernel, batch=B, seq=S, d=D)
    out_flat = pl.pallas_call(
        kern,
        out_shape=jax.ShapeDtypeStruct((1, BS), jnp.float32),
        # Grid-less single-shot call: whole arrays resident in VMEM.
        in_specs=[
            pl.BlockSpec(memory_space=pltpu.MemorySpace.VMEM),
            pl.BlockSpec(memory_space=pltpu.MemorySpace.VMEM),
        ],
        out_specs=pl.BlockSpec(memory_space=pltpu.MemorySpace.VMEM),
    )(x, packed_params)
    return out_flat.reshape(B, S)


def reference(embedding, W, bias, u_w):
    """Pure-JAX mirror of the PyTorch forward."""
    ut = jnp.tanh(jnp.einsum('bsd,td->bst', embedding, W) + bias)
    a = jnp.einsum('bst,to->bso', ut, u_w)[..., 0]
    return jax.nn.log_softmax(a, axis=1)


if __name__ == "__main__":
    key = jax.random.PRNGKey(0)
    k_emb, k_w, k_b, k_uw = jax.random.split(key, 4)

    # Input to Phrase_attention: the n-gram feature sequence (B, T, embed_size).
    embedding = jax.random.normal(k_emb, (BATCH_SIZE, SEQ_LEN, EMBED_SIZE), jnp.float32)
    W = 0.1 * jax.random.normal(k_w, (T, EMBED_SIZE), jnp.float32)      # Linear weight (out, in)
    bias = 0.1 * jax.random.normal(k_b, (T,), jnp.float32)              # Linear bias
    lim = (6.0 / (T + 1)) ** 0.5                                        # xavier_uniform bound
    u_w = jax.random.uniform(k_uw, (T, 1), jnp.float32, -lim, lim)

    packed = pack_params(W, bias, u_w)                                  # once, at init

    out = phrase_attention(embedding, packed)
    out = jax.block_until_ready(out)

    ref = reference(embedding, W, bias, u_w)
    assert out.shape == (BATCH_SIZE, SEQ_LEN), out.shape
    assert jnp.allclose(out, ref, rtol=1e-3, atol=1e-4), (out, ref)
    print("KERNEL_OK")
</pallas_src>

<mosaic_0001>
module attributes {stable_mosaic.version = 11 : i64} {
  func.func @phrase_attention_kernel(%arg0: memref<28x32xf32, #tpu.memory_space<vmem>>, %arg1: memref<14x34xf32, #tpu.memory_space<vmem>>, %arg2: memref<1x28xf32, #tpu.memory_space<vmem>>) attributes {dimension_semantics = [], scalar_prefetch = 0 : i64, scratch_operands = 0 : i64, tpu.core_type = #tpu.core_type<tc>} {
    %c0 = arith.constant 0 : index
    %c0_0 = arith.constant 0 : index
    %0 = vector.load %arg0[%c0, %c0_0] : memref<28x32xf32, #tpu.memory_space<vmem>>, vector<28x32xf32>
    %c0_1 = arith.constant 0 : index
    %c0_2 = arith.constant 0 : index
    %1 = vector.load %arg1[%c0_1, %c0_2] : memref<14x34xf32, #tpu.memory_space<vmem>>, vector<14x32xf32>
    %c0_3 = arith.constant 0 : index
    %c32 = arith.constant 32 : index
    %2 = vector.load %arg1[%c0_3, %c32] : memref<14x34xf32, #tpu.memory_space<vmem>>, vector<14x1xf32>
    %c0_4 = arith.constant 0 : index
    %c33 = arith.constant 33 : index
    %3 = vector.load %arg1[%c0_4, %c33] : memref<14x34xf32, #tpu.memory_space<vmem>>, vector<14x1xf32>
    %cst = arith.constant dense<0.000000e+00> : vector<14x28xf32>
    %4 = tpu.matmul %1, %0, %cst {dimension_numbers = #tpu.dot_dimension_numbers<[1], [1], [0], [0], [0, 0, 1, 0], [], []>} : vector<14x32xf32>, vector<28x32xf32>, vector<14x28xf32> -> vector<14x28xf32>
    %5 = vector.broadcast %2 : vector<14x1xf32> to vector<14x28xf32>
    %6 = arith.addf %4, %5 : vector<14x28xf32>
    %7 = math.tanh %6 : vector<14x28xf32>
    %8 = vector.broadcast %3 : vector<14x1xf32> to vector<14x28xf32>
    %9 = arith.mulf %7, %8 : vector<14x28xf32>
    %cst_5 = arith.constant dense<0.000000e+00> : vector<28xf32>
    %10 = vector.multi_reduction <add>, %9, %cst_5 [0] : vector<14x28xf32> to vector<28xf32>
    %11 = vector.shape_cast %10 : vector<28xf32> to vector<1x28xf32>
    %12 = tpu.iota {dimensions = array<i32: 1>} : vector<1x28xi32>
    %cst_6 = arith.constant 0.000000e+00 : f32
    %13 = vector.broadcast %cst_6 : f32 to vector<1x28xf32>
    %c0_i32 = arith.constant 0 : i32
    %14 = vector.broadcast %c0_i32 : i32 to vector<1x28xi32>
    %15 = arith.cmpi sge, %12, %14 : vector<1x28xi32>
    %c14_i32 = arith.constant 14 : i32
    %16 = vector.broadcast %c14_i32 : i32 to vector<1x28xi32>
    %17 = arith.cmpi slt, %12, %16 : vector<1x28xi32>
    %18 = arith.andi %15, %17 : vector<1x28xi1>
    %cst_7 = arith.constant 0xFF800000 : f32
    %19 = vector.broadcast %cst_7 : f32 to vector<1x28xf32>
    %20 = arith.select %18, %11, %19 : vector<1x28xi1>, vector<1x28xf32>
    %21 = vector.shape_cast %20 : vector<1x28xf32> to vector<1x1x28xf32>
    %cst_8 = arith.constant dense<0xFF800000> : vector<1xf32>
    %22 = vector.multi_reduction <maximumf>, %21, %cst_8 [1, 2] : vector<1x1x28xf32> to vector<1xf32>
    %23 = vector.shape_cast %22 : vector<1xf32> to vector<1x1x1xf32>
    %24 = vector.extract %23[0, 0, 0] : f32 from vector<1x1x1xf32>
    %25 = vector.broadcast %24 : f32 to vector<1x28xf32>
    %26 = arith.subf %11, %25 : vector<1x28xf32>
    %27 = math.exp %26 : vector<1x28xf32>
    %cst_9 = arith.constant 0.000000e+00 : f32
    %28 = vector.broadcast %cst_9 : f32 to vector<1x28xf32>
    %29 = arith.select %18, %27, %28 : vector<1x28xi1>, vector<1x28xf32>
    %30 = vector.shape_cast %29 : vector<1x28xf32> to vector<1x1x28xf32>
    %cst_10 = arith.constant dense<0.000000e+00> : vector<1xf32>
    %31 = vector.multi_reduction <add>, %30, %cst_10 [1, 2] : vector<1x1x28xf32> to vector<1xf32>
    %32 = vector.shape_cast %31 : vector<1xf32> to vector<1x1x1xf32>
    %33 = vector.extract %32[0, 0, 0] : f32 from vector<1x1x1xf32>
    %34 = vector.broadcast %24 : f32 to vector<1x28xf32>
    %35 = arith.subf %11, %34 : vector<1x28xf32>
    %36 = math.log %33 : f32
    %37 = vector.broadcast %36 : f32 to vector<1x28xf32>
    %38 = arith.subf %35, %37 : vector<1x28xf32>
    %39 = arith.select %18, %38, %13 : vector<1x28xi1>, vector<1x28xf32>
    %c14_i32_11 = arith.constant 14 : i32
    %40 = vector.broadcast %c14_i32_11 : i32 to vector<1x28xi32>
    %41 = arith.cmpi sge, %12, %40 : vector<1x28xi32>
    %c28_i32 = arith.constant 28 : i32
    %42 = vector.broadcast %c28_i32 : i32 to vector<1x28xi32>
    %43 = arith.cmpi slt, %12, %42 : vector<1x28xi32>
    %44 = arith.andi %41, %43 : vector<1x28xi1>
    %cst_12 = arith.constant 0xFF800000 : f32
    %45 = vector.broadcast %cst_12 : f32 to vector<1x28xf32>
    %46 = arith.select %44, %11, %45 : vector<1x28xi1>, vector<1x28xf32>
    %47 = vector.shape_cast %46 : vector<1x28xf32> to vector<1x1x28xf32>
    %cst_13 = arith.constant dense<0xFF800000> : vector<1xf32>
    %48 = vector.multi_reduction <maximumf>, %47, %cst_13 [1, 2] : vector<1x1x28xf32> to vector<1xf32>
    %49 = vector.shape_cast %48 : vector<1xf32> to vector<1x1x1xf32>
    %50 = vector.extract %49[0, 0, 0] : f32 from vector<1x1x1xf32>
    %51 = vector.broadcast %50 : f32 to vector<1x28xf32>
    %52 = arith.subf %11, %51 : vector<1x28xf32>
    %53 = math.exp %52 : vector<1x28xf32>
    %cst_14 = arith.constant 0.000000e+00 : f32
    %54 = vector.broadcast %cst_14 : f32 to vector<1x28xf32>
    %55 = arith.select %44, %53, %54 : vector<1x28xi1>, vector<1x28xf32>
    %56 = vector.shape_cast %55 : vector<1x28xf32> to vector<1x1x28xf32>
    %cst_15 = arith.constant dense<0.000000e+00> : vector<1xf32>
    %57 = vector.multi_reduction <add>, %56, %cst_15 [1, 2] : vector<1x1x28xf32> to vector<1xf32>
    %58 = vector.shape_cast %57 : vector<1xf32> to vector<1x1x1xf32>
    %59 = vector.extract %58[0, 0, 0] : f32 from vector<1x1x1xf32>
    %60 = vector.broadcast %50 : f32 to vector<1x28xf32>
    %61 = arith.subf %11, %60 : vector<1x28xf32>
    %62 = math.log %59 : f32
    %63 = vector.broadcast %62 : f32 to vector<1x28xf32>
    %64 = arith.subf %61, %63 : vector<1x28xf32>
    %65 = arith.select %44, %64, %39 : vector<1x28xi1>, vector<1x28xf32>
    %c0_16 = arith.constant 0 : index
    %c0_17 = arith.constant 0 : index
    %66 = vector.load %arg2[%c0_16, %c0_17] : memref<1x28xf32, #tpu.memory_space<vmem>>, vector<1x28xf32>
    tpu.vector_store %arg2[%c0_16, %c0_17], %65 {strides = array<i32>} : memref<1x28xf32, #tpu.memory_space<vmem>>, vector<1x28xf32>,
    return
  }
}

</mosaic_0001>

<llo_original>
// kernel: tpu_custom_call.1
$region0: #{tpu_custom_call.1}
  #allocation0 [shape = 'u32[]', space=smem, size = 0x4, offset = 0x4, fixed_abs, tag = 'smem constant byte address 0x4 - core index']
  #allocation1 [shape = 'u32[144,128]{1,0:T(1,128)}', space=vmem, size = 0x12000, scoped, tag = 'internal scratch']
  %s0 = inlined_call_operand.hbm [shape: f32[28,32], index: 0, kind: input, shape index: {}]
  %s1 = inlined_call_operand.hbm [shape: f32[14,34], index: 1, kind: input, shape index: {}]
  %s2 = inlined_call_operand.hbm [shape: f32[1,28], index: 2, kind: output, shape index: {}]
  %s3 = sld [smem:[#allocation0]]
  $region26: #{tpu_custom_call.1} parent=0
    _
  %s5 = ssub.s32 1, %s3
  %s6 = scalar_select 0, %s5, %s3
  $region1: #{tpu_custom_call.1} parent=0
    #allocation2 [shape = 'u8[16384]{0}', space=vmem, size = 0x4000, scoped, tag = 'input window, operand 0, single buffered']
    #allocation3 [shape = 's32[1]{0}', space=sflag, size = 0x4, scoped, tag = 'scoped memory for tpu_custom_call.1']
    #allocation4 [shape = 's32[1]{0}', space=sflag, size = 0x4, scoped, tag = 'scoped memory for tpu_custom_call.1']
    #allocation5 [shape = 'u8[8192]{0}', space=vmem, size = 0x2000, scoped, tag = 'input window, operand 1, single buffered']
    #allocation6 [shape = 's32[1]{0}', space=sflag, size = 0x4, scoped, tag = 'scoped memory for tpu_custom_call.1']
    #allocation7 [shape = 'u8[512]{0}', space=vmem, size = 0x400, scoped, tag = 'output window, operand 0, single buffered']
    %7 = vsyncpa [#allocation3], 0
    %8 = vsyncpa [#allocation6], 0
    %9 = vsyncpa [#allocation4], 0
    // Predicated region
    $region2: #{tpu_custom_call.1} parent=1 // pred_check
      _
    $region3: #{tpu_custom_call.1} parent=1 // pred_check_branch
      %11 = sbr.rel (0) target = $region5
    $region4: #{tpu_custom_call.1} parent=1 // pred_region
      %s13 = ssub.s32 512, 512
      %14 = vsyncadd [#allocation3], %s13
      %s15 = sshll.u32 [#allocation2], 4
      %s16 = int_to_ptr.vmem [resolvable:$true] %s15
      %21 = dma.hbm_to_vmem [thread:$0]  %s0, 512, %s16, [#allocation3], 128, 128, 8
    $region5: #{tpu_custom_call.1} parent=1 // pred_fallthru
      _
    // Predicated region
    $region6: #{tpu_custom_call.1} parent=1 // pred_check
      _
    $region7: #{tpu_custom_call.1} parent=1 // pred_check_branch
      %23 = sbr.rel (0) target = $region9
    $region8: #{tpu_custom_call.1} parent=1 // pred_region
      %s25 = ssub.s32 256, 256
      %26 = vsyncadd [#allocation6], %s25
      %s27 = sshll.u32 [#allocation5], 4
      %s28 = int_to_ptr.vmem [resolvable:$true] %s27
      %33 = dma.hbm_to_vmem [thread:$0]  %s1, 256, %s28, [#allocation6], 128, 128, 8
    $region9: #{tpu_custom_call.1} parent=1 // pred_fallthru
      _
    // Predicated region
    $region10: #{tpu_custom_call.1} parent=1 // pred_check
      _
    $region11: #{tpu_custom_call.1} parent=1 // pred_check_branch
      %35 = sbr.rel (0) target = $region13
    $region12: #{tpu_custom_call.1} parent=1 // pred_region
      %36 = dma.done [#allocation3], 512
    $region13: #{tpu_custom_call.1} parent=1 // pred_fallthru
      _
    // Predicated region
    $region14: #{tpu_custom_call.1} parent=1 // pred_check
      _
    $region15: #{tpu_custom_call.1} parent=1 // pred_check_branch
      %38 = sbr.rel (0) target = $region17
    $region16: #{tpu_custom_call.1} parent=1 // pred_region
      %39 = dma.done [#allocation6], 256
    $region17: #{tpu_custom_call.1} parent=1 // pred_fallthru
      _
    %v40 = vld [vmem:[#allocation2] sm:$0xff]
    %v41 = vld [vmem:[#allocation2 + $0x8] sm:$0xff]
    %v42 = vld [vmem:[#allocation2 + $0x10] sm:$0xff]
    %v43 = vld [vmem:[#allocation2 + $0x18] sm:$0xf]
    %v44 = vld [vmem:[#allocation5] sm:$0xff]
    %v45 = vld [vmem:[#allocation5 + $0x8] sm:$0x3f]
    %47 = vset.pattern.permute.xlu0 32
    %48 = vperm.xlu0 %47, %v44
    %v49 = vpop.permute.xlu0 %48
    %52 = vset.pattern.permute.xlu0 32
    %53 = vperm.xlu0 %52, %v45
    %v54 = vpop.permute.xlu0 %53
    %vm56 = vcmask 261120
    %v57 = vsel %vm56, %v44, 0
    %v59 = vsel %vm56, %v45, 0
    %v62 = vsel %vm56, %v40, 0
    %v65 = vsel %vm56, %v41, 0
    %v68 = vsel %vm56, %v42, 0
    %v71 = vsel %vm56, %v43, 0
    %73 = vmatprep.subr.mxu0 0.0
    %74 = vmatpush1.xpose.msra.mxu0 %v62
    %75 = vmatprep.subr.mxu0 0.0
    %76 = vmatpush1.xpose.msra.mxu0 %v65
    %77 = vmatprep.subr.mxu0 0.0
    %78 = vmatpush1.xpose.msra.mxu0 %v68
    %79 = vmatprep.subr.mxu0 0.0
    %80 = vmatpush1.xpose.msra.mxu0 %v71
    %81 = vmatprep.subr.mxu0 0.0
    %82 = vmatpush1.xpose.msra.mxu0 0.0
    %83 = vmatprep.subr.mxu0 0.0
    %84 = vmatpush1.xpose.msra.mxu0 0.0
    %85 = vmatprep.subr.mxu0 0.0
    %86 = vmatpush1.xpose.msra.mxu0 0.0
    %87 = vmatprep.subr.mxu0 0.0
    %88 = vmatpush1.xpose.msra.mxu0 0.0
    %89 = vmatprep.subr.mxu0 0.0
    %90 = vmatpush1.xpose.msra.mxu0 0.0
    %91 = vmatprep.subr.mxu0 0.0
    %92 = vmatpush1.xpose.msra.mxu0 0.0
    %93 = vmatprep.subr.mxu0 0.0
    %94 = vmatpush1.xpose.msra.mxu0 0.0
    %95 = vmatprep.subr.mxu0 0.0
    %96 = vmatpush1.xpose.msra.mxu0 0.0
    %97 = vmatprep.subr.mxu0 0.0
    %98 = vmatpush1.xpose.msra.mxu0 0.0
    %99 = vmatprep.subr.mxu0 0.0
    %100 = vmatpush1.xpose.msra.mxu0 0.0
    %101 = vmatprep.subr.mxu0 0.0
    %102 = vmatpush1.xpose.msra.mxu0 0.0
    %103 = vmatprep.subr.mxu0 0.0
    %104 = vmatpush1.xpose.msra.mxu0 0.0
    %105 = vmatprep.subr.mxu0 0.0
    %106 = vmatpush1.xpose.msra.mxu0 0.0
    %107 = vmatprep.subr.mxu0 0.0
    %108 = vmatpush1.xpose.msra.mxu0 0.0
    %109 = vmatprep.subr.mxu0 0.0
    %110 = vmatpush1.xpose.msra.mxu0 0.0
    %111 = vmatprep.subr.mxu0 0.0
    %112 = vmatpush1.xpose.msra.mxu0 0.0
    %113 = vmatprep.subr.mxu0 0.0
    %114 = vmatpush1.xpose.msra.mxu0 0.0
    %115 = vmatprep.subr.mxu0 0.0
    %116 = vmatpush1.xpose.msra.mxu0 0.0
    %117 = vmatprep.subr.mxu0 0.0
    %118 = vmatpush1.xpose.msra.mxu0 0.0
    %119 = vmatprep.subr.mxu0 0.0
    %120 = vmatpush1.xpose.msra.mxu0 0.0
    %121 = vmatprep.subr.mxu0 0.0
    %122 = vmatpush1.xpose.msra.mxu0 0.0
    %123 = vmatprep.subr.mxu0 0.0
    %124 = vmatpush1.xpose.msra.mxu0 0.0
    %125 = vmatprep.subr.mxu0 0.0
    %126 = vmatpush1.xpose.msra.mxu0 0.0
    %127 = vmatprep.subr.mxu0 0.0
    %128 = vmatpush1.xpose.msra.mxu0 0.0
    %129 = vmatprep.subr.mxu0 0.0
    %130 = vmatpush1.xpose.msra.mxu0 0.0
    %131 = vmatprep.subr.mxu0 0.0
    %132 = vmatpush1.xpose.msra.mxu0 0.0
    %133 = vmatprep.subr.mxu0 0.0
    %134 = vmatpush1.xpose.msra.mxu0 0.0
    %135 = vmatprep.subr.mxu0 0.0
    %136 = vmatpush1.xpose.msra.mxu0 0.0
    %137 = vmatprep.mubr.f32.mxu0 0.0
    %138 = vmatmul.mubr.f32.gmra.mrb[0].mxu0 %v57
    %v139 = vpop.f32.mrb[0].mxu0
    %v140 = vadd.f32 %v49, %v139
    %v141 = vpop.f32.mrb[0].mxu0
    %142 = vmatprep.mubr.f32.mxu0 0.0
    %143 = vmatmul.mubr.f32.gmra.mrb[0].mxu0 %v59
    %v144 = vpop.f32.mrb[0].mxu0
    %v145 = vadd.f32 %v54, %v144
    %v146 = vpop.f32.mrb[0].mxu0
    %147 = vdwg.mxu0
    %v148 = vtanh.pop %v140
    %v149 = vtanh.pop %v145
    %150 = vset.pattern.permute.xlu0 33
    %151 = vperm.xlu0 %150, %v44
    %v152 = vpop.permute.xlu0 %151
    %154 = vset.pattern.permute.xlu0 33
    %155 = vperm.xlu0 %154, %v45
    %v156 = vpop.permute.xlu0 %155
    %v158 = vmul.f32 %v148, %v152
    %v159 = vmul.f32 %v149, %v156
    %vm160 = vcmask 228352
    %v161 = vsel %vm160, %v158, 0.0
    %vm162 = vcmask 226304
    %v163 = vsel %vm162, %v159, 0.0
    %v164 = vadd.f32 %v161, %v163
    %v165 = vrot.slane %v164, 4
    %v166 = vadd.f32 %v164, %v165
    %v167 = vrot.slane %v166, 2
    %v168 = vadd.f32 %v166, %v167
    %v169 = vrot.slane %v168, 1
    %v170 = vadd.f32 %v168, %v169
    %v171 = vlaneseq
    %v172 = vand.u32 %v171, 127
    %vm173 = vcmp.ge.s32.totalorder %v172, 0
    %vm174 = vcmp.lt.s32.totalorder %v172, 14
    %vm175 = vmand %vm173, %vm174
    %v176 = vsel %vm175, %v170, -inf
    %v177 = vsel %vm160, %v176, -inf
    %178 = vmax.xlane.f32.xlu0 %v177
    %v179 = vpop.xlane.xlu0 %178
    %s180 = vtos %v179
    %v181 = vstv %s180
    %v182 = vsub.f32 %v170, %v181
    %v183 = vmul.f32 %v182, 1.442695
    %v184 = vpow.pop %v183
    %v185 = vsel %vm175, %v184, 0.0
    %vm186 = vcmask 221184
    %v187 = vsel %vm186, %v185, 0.0
    %188 = vadd.xlane.f32.xlu0 %v187
    %v189 = vpop.xlane.xlu0 %188
    %v190 = vrot.slane %v189, 4
    %v191 = vadd.f32 %v189, %v190
    %v192 = vrot.slane %v191, 2
    %v193 = vadd.f32 %v191, %v192
    %v194 = vrot.slane %v193, 1
    %v195 = vadd.f32 %v193, %v194
    %s196 = vtos %v195
    %v197 = vstv %s196
    %v198 = vlog2.pop %v197
    %v199 = vmul.f32 %v198, 0.6931472
    %s200 = vtos %v199
    %v201 = vstv %s200
    %v202 = vsub.f32 %v182, %v201
    %v203 = vsel %vm175, %v202, 0.0
    %vm204 = vcmp.ge.s32.totalorder %v172, 14
    %vm205 = vcmp.lt.s32.totalorder %v172, 28
    %vm206 = vmand %vm204, %vm205
    %v207 = vsel %vm206, %v170, -inf
    %v208 = vsel %vm160, %v207, -inf
    %209 = vmax.xlane.f32.xlu0 %v208
    %v210 = vpop.xlane.xlu0 %209
    %s211 = vtos %v210
    %v212 = vstv %s211
    %v213 = vsub.f32 %v170, %v212
    %v214 = vmul.f32 %v213, 1.442695
    %v215 = vpow.pop %v214
    %v216 = vsel %vm206, %v215, 0.0
    %v217 = vsel %vm186, %v216, 0.0
    %218 = vadd.xlane.f32.xlu0 %v217
    %v219 = vpop.xlane.xlu0 %218
    %v220 = vrot.slane %v219, 4
    %v221 = vadd.f32 %v219, %v220
    %v222 = vrot.slane %v221, 2
    %v223 = vadd.f32 %v221, %v222
    %v224 = vrot.slane %v223, 1
    %v225 = vadd.f32 %v223, %v224
    %s226 = vtos %v225
    %v227 = vstv %s226
    %v228 = vlog2.pop %v227
    %v229 = vmul.f32 %v228, 0.6931472
    %s230 = vtos %v229
    %v231 = vstv %s230
    %v232 = vsub.f32 %v213, %v231
    %v233 = vsel %vm206, %v232, %v203
    %234 = vst.msk [vmem:[#allocation7] sm:$0x1] %vm186, %v233
    // Predicated region
    $region18: #{tpu_custom_call.1} parent=1 // pred_check
      _
    $region19: #{tpu_custom_call.1} parent=1 // pred_check_branch
      %236 = sbr.rel (0) target = $region21
    $region20: #{tpu_custom_call.1} parent=1 // pred_region
      %s238 = ssub.s32 16, 16
      %239 = vsyncadd [#allocation4], %s238
      %s241 = sshll.u32 [#allocation7], 4
      %s242 = int_to_ptr.vmem [resolvable:$true] %s241
      %244 = dma.vmem_to_hbm [thread:$0]  %s242, 16, %s2, [#allocation4]
    $region21: #{tpu_custom_call.1} parent=1 // pred_fallthru
      _
    // Predicated region
    $region22: #{tpu_custom_call.1} parent=1 // pred_check
      _
    $region23: #{tpu_custom_call.1} parent=1 // pred_check_branch
      %246 = sbr.rel (0) target = $region25
    $region24: #{tpu_custom_call.1} parent=1 // pred_region
      %247 = dma.done [#allocation4], 16
    $region25: #{tpu_custom_call.1} parent=1 // pred_fallthru
      _
    %248 = vsyncpa [#allocation3], 1
    %249 = vsyncpa [#allocation6], 1
    %250 = vsyncpa [#allocation4], 1

</llo_original>
